<compile_context>
chip_gen: v5e
topology: v5e:2x2
jax: 0.10.0
libtpu: 0.0.40
codegen_flags: <defaults>
</compile_context>

<pallas_src>
import functools
import math

import jax
import jax.numpy as jnp
from jax import lax
from jax.experimental import pallas as pl
from jax.experimental.pallas import tpu as pltpu


def _round_up(x, m):
    return ((x + m - 1) // m) * m


def _vmem_capacity_bytes():
    try:
        return int(pltpu.get_tpu_info().vmem_capacity_bytes)
    except Exception:
        return 64 << 20  # conservative default: v7x per-TensorCore VMEM


def _choose_chunk(n_tokens, target, row_align):
    """Pick tokens-per-chunk T (a multiple of `row_align`).

    Prefers a divisor of `n_tokens` (no padded output rows -> no post-kernel
    slice copy), falling back to padding when only tiny divisors exist.
    Returns (T, padded_token_count).
    """
    target = max(row_align, (target // row_align) * row_align)
    if n_tokens % row_align == 0:
        floor = min(n_tokens, max(row_align, target // 4))
        cand = (min(target, n_tokens) // row_align) * row_align
        while cand >= floor:
            if n_tokens % cand == 0:
                return cand, n_tokens
            cand -= row_align
    t = min(target, _round_up(n_tokens, row_align))
    t = max(row_align, (t // row_align) * row_align)
    return t, _round_up(n_tokens, t)


def _embed_onehot_kernel(ids_ref, table_ref, out_ref, *, scale):
    """Small-vocab path: row gather expressed as a one-hot MXU matmul.

    ids_ref   : VMEM (T, 1) int32   token ids of this chunk (sublane axis)
    table_ref : VMEM (V, D)         embedding table, resident across the grid
    out_ref   : VMEM (T, D)         dense output block for this chunk
    """
    t = out_ref.shape[0]
    v = table_ref.shape[0]
    ids = ids_ref[...]                                            # (T, 1) int32
    onehot = (ids == lax.broadcasted_iota(jnp.int32, (t, v), 1)).astype(
        table_ref.dtype)                                          # (T, V)
    acc = jnp.dot(onehot, table_ref[...],
                  preferred_element_type=jnp.float32)             # (T, D) f32
    out_ref[...] = (acc * scale).astype(out_ref.dtype)            # one dense store


def _embed_gather_kernel(ids_ref, table_ref, out_ref, *, scale, rows_per_group):
    """Larger-vocab path: scalar row gather with packed dense stores.

    ids_ref   : SMEM (1, T) int32   token ids of this chunk (scalar reads)
    table_ref : VMEM (V, D)         embedding table, resident across the grid
    out_ref   : VMEM (T, D)         dense output block for this chunk
    """
    t, _ = out_ref.shape
    num_groups = t // rows_per_group

    def group(g, carry):
        base = pl.multiple_of(g * rows_per_group, rows_per_group)
        # Gather rows_per_group rows and pack them so the store is a single
        # unmasked (rows_per_group, D) write rather than rows_per_group masked
        # (1, D) writes (the vst slot was the binding unit before).
        rows = [table_ref[pl.ds(ids_ref[0, base + r], 1), :]
                for r in range(rows_per_group)]
        block = jnp.concatenate(rows, axis=0)
        out_ref[pl.ds(base, rows_per_group), :] = (
            block.astype(jnp.float32) * scale).astype(out_ref.dtype)
        return carry

    unroll = next(u for u in (8, 4, 2, 1) if num_groups % u == 0)
    lax.fori_loop(0, num_groups, group, 0, unroll=unroll)


def embedding_forward(token_ids_batch, embeddings_table, model_dimension, *,
                      tokens_per_chunk=None):
    assert token_ids_batch.ndim == 2, (
        f"Expected: (batch size, max token sequence length), "
        f"got {token_ids_batch.shape}")
    b, s = token_ids_batch.shape
    v, d = embeddings_table.shape
    assert d == model_dimension

    dtype = embeddings_table.dtype
    itemsize = jnp.dtype(dtype).itemsize
    scale = float(math.sqrt(model_dimension))

    # Sublane packing factor of the table dtype: 8 rows f32, 16 bf16, 32 int8.
    # Chunk size and store-group size are multiples of this for dense stores.
    # (D not a multiple of 128 remains correct but stores become partial;
    #  TODO(synk): pad D to a lane multiple inside the kernel in that case.)
    row_align = max(8, 32 // itemsize)

    n = b * s
    table_bytes = v * d * itemsize

    vmem_cap = _vmem_capacity_bytes()
    budget = (vmem_cap * 3) // 4

    if tokens_per_chunk is None:
        # Bigger chunks when the table leaves VMEM room (128 MiB parts);
        # 256 when a large resident table crowds VMEM (v7x: 64 MiB per core).
        tokens_per_chunk = 256
        for cand in (1024, 512):
            if table_bytes + 4 * cand * d * max(itemsize, 4) + (2 << 20) <= budget:
                tokens_per_chunk = cand
                break

    t, n_pad = _choose_chunk(n, tokens_per_chunk, row_align)
    num_chunks = n_pad // t

    # nn.Embedding errors on out-of-range ids; we clip once here instead
    # (documented choice) so every in-kernel row access is in-bounds.
    ids_flat = jnp.clip(token_ids_batch.reshape(n).astype(jnp.int32), 0, v - 1)
    if n_pad != n:
        ids_flat = jnp.pad(ids_flat, (0, n_pad - n))  # pad with id 0 (valid)

    # Path selection: small float vocabs -> one-hot MXU matmul (no masked
    # loads/stores at all); otherwise scalar gather with packed stores.
    onehot_max_v = 512 if itemsize >= 4 else 1024
    use_onehot = (v <= onehot_max_v) and jnp.issubdtype(dtype, jnp.floating)

    out_block_bytes = t * d * itemsize
    work_bytes = t * d * 4 + (t * v * 4 if use_onehot else 0)
    vmem_needed = table_bytes + 2 * out_block_bytes + work_bytes + (2 << 20)
    assert vmem_needed <= budget, (
        f"Embedding table too large for the VMEM-resident path on this TPU "
        f"generation ({vmem_needed} B needed, {budget} B budget). "
        "TODO(synk): add the HBM row-gather path (memory_space=pl.ANY + "
        "double-buffered per-row-group DMAs driven by SMEM ids).")
    vmem_limit = max(vmem_needed + table_bytes + (4 << 20), 32 << 20)
    vmem_limit = int(min(vmem_limit, vmem_cap - (2 << 20)))

    if use_onehot:
        kernel = functools.partial(_embed_onehot_kernel, scale=scale)
        ids_arg = ids_flat.reshape(n_pad, 1)
        ids_spec = pl.BlockSpec((t, 1), lambda c: (c, 0))
        flops = 2 * n_pad * v * d + n_pad * d
    else:
        kernel = functools.partial(_embed_gather_kernel, scale=scale,
                                   rows_per_group=row_align)
        ids_arg = ids_flat.reshape(num_chunks, t)
        # Per-chunk ids in SMEM: only T ids resident, pipelined by BlockSpec.
        ids_spec = pl.BlockSpec((1, t), lambda c: (c, 0),
                                memory_space=pltpu.MemorySpace.SMEM)
        flops = n_pad * d

    out_spec = pl.BlockSpec((t, d), lambda c: (c, 0))
    cost = pl.CostEstimate(
        flops=flops, transcendentals=0,
        bytes_accessed=table_bytes + n_pad * d * itemsize + n_pad * 4)

    def build(single_buffer_table):
        if single_buffer_table:
            # Constant block index -> table DMA'd once; the default second
            # pipeline buffer would only waste VMEM (critical on v7x).
            table_spec = pl.BlockSpec((v, d), lambda c: (0, 0),
                                      pipeline_mode=pl.Buffered(1))
        else:
            table_spec = pl.BlockSpec((v, d), lambda c: (0, 0))
        return pl.pallas_call(
            kernel,
            out_shape=jax.ShapeDtypeStruct((n_pad, d), dtype),
            grid_spec=pltpu.PrefetchScalarGridSpec(
                num_scalar_prefetch=0,
                grid=(num_chunks,),
                in_specs=[ids_spec, table_spec],
                out_specs=out_spec,
            ),
            compiler_params=pltpu.CompilerParams(
                dimension_semantics=("parallel",),
                vmem_limit_bytes=vmem_limit,
            ),
            cost_estimate=cost,
        )

    try:
        out_flat = build(single_buffer_table=True)(ids_arg, embeddings_table)
    except Exception:
        # Fallback for Pallas versions without pipeline_mode / Buffered(1).
        out_flat = build(single_buffer_table=False)(ids_arg, embeddings_table)

    if n_pad != n:
        # TODO(synk): emit (B, S, D) directly and chunk along S to avoid this
        # extra slice copy for ragged token counts.
        out_flat = out_flat[:n]
    return out_flat.reshape(b, s, d)


if __name__ == "__main__":
    # Small shapes consistent with the module's forward (V=64 -> one-hot path).
    vocab_size = 64
    model_dimension = 128
    batch, seq = 2, 8

    key = jax.random.PRNGKey(0)
    k_tbl, k_ids = jax.random.split(key)

    # nn.Embedding default init ~ N(0, 1)
    embeddings_table = jax.random.normal(
        k_tbl, (vocab_size, model_dimension), dtype=jnp.float32)
    token_ids_batch = jax.random.randint(
        k_ids, (batch, seq), 0, vocab_size, dtype=jnp.int32)

    out = embedding_forward(token_ids_batch, embeddings_table, model_dimension)
    out = jax.block_until_ready(out)

    # Reference check (plain JAX gather + scale).  Tolerance leaves headroom
    # for MXU pass-decomposition of the f32 one-hot matmul; a wrong-row or
    # wrong-scale bug would be off by O(10), far outside this tolerance.
    ref = jnp.take(embeddings_table, token_ids_batch, axis=0) * math.sqrt(
        model_dimension)
    assert out.shape == (batch, seq, model_dimension)
    assert jnp.allclose(out, ref, atol=1e-2, rtol=1e-2)

    print("KERNEL_OK")
</pallas_src>

<mosaic_0001>
module attributes {stable_mosaic.version = 11 : i64} {
  func.func @_embed_onehot_kernel(%arg0: i32, %arg1: memref<16x1xi32, #tpu.memory_space<vmem>>, %arg2: memref<64x128xf32, #tpu.memory_space<vmem>>, %arg3: memref<16x128xf32, #tpu.memory_space<vmem>>) attributes {dimension_semantics = [#tpu.dimension_semantics<parallel>], iteration_bounds = array<i64: 1>, scalar_prefetch = 0 : i64, scratch_operands = 0 : i64, tpu.core_type = #tpu.core_type<tc>, window_params = [{transform_indices = @transform_0, window_bounds = array<i64: 16, 1>}, {pipeline_mode = #tpu.pipeline_mode<synchronous>, transform_indices = @transform_1, window_bounds = array<i64: 64, 128>}, {transform_indices = @transform_2, window_bounds = array<i64: 16, 128>}]} {
    %c0 = arith.constant 0 : index
    %c0_0 = arith.constant 0 : index
    %0 = vector.load %arg1[%c0, %c0_0] : memref<16x1xi32, #tpu.memory_space<vmem>>, vector<16x1xi32>
    %1 = tpu.iota {dimensions = array<i32: 1>} : vector<16x64xi32>
    %2 = vector.broadcast %0 : vector<16x1xi32> to vector<16x64xi32>
    %3 = arith.cmpi eq, %2, %1 : vector<16x64xi32>
    %4 = arith.extui %3 : vector<16x64xi1> to vector<16x64xi32>
    %5 = arith.sitofp %4 : vector<16x64xi32> to vector<16x64xf32>
    %c0_1 = arith.constant 0 : index
    %c0_2 = arith.constant 0 : index
    %6 = vector.load %arg2[%c0_1, %c0_2] : memref<64x128xf32, #tpu.memory_space<vmem>>, vector<64x128xf32>
    %cst = arith.constant dense<0.000000e+00> : vector<16x128xf32>
    %7 = tpu.matmul %5, %6, %cst {dimension_numbers = #tpu.dot_dimension_numbers<[1], [0], [0], [1], [0, 0, 1, 1], [], []>} : vector<16x64xf32>, vector<64x128xf32>, vector<16x128xf32> -> vector<16x128xf32>
    %cst_3 = arith.constant 11.3137083 : f32
    %8 = vector.broadcast %cst_3 : f32 to vector<16x128xf32>
    %9 = arith.mulf %7, %8 : vector<16x128xf32>
    %c0_4 = arith.constant 0 : index
    %c0_5 = arith.constant 0 : index
    %10 = vector.load %arg3[%c0_4, %c0_5] : memref<16x128xf32, #tpu.memory_space<vmem>>, vector<16x128xf32>
    tpu.vector_store %arg3[%c0_4, %c0_5], %9 {strides = array<i32>} : memref<16x128xf32, #tpu.memory_space<vmem>>, vector<16x128xf32>,
    return
  }
  func.func @transform_0(%arg0: i32) -> (i32, i32) {
    %c0_i32 = arith.constant 0 : i32
    %c0_i32_0 = arith.constant 0 : i32
    return %arg0, %c0_i32 : i32, i32
  }
  func.func @transform_1(%arg0: i32) -> (i32, i32) {
    %c0_i32 = arith.constant 0 : i32
    %c0_i32_0 = arith.constant 0 : i32
    %c0_i32_1 = arith.constant 0 : i32
    return %c0_i32, %c0_i32_0 : i32, i32
  }
  func.func @transform_2(%arg0: i32) -> (i32, i32) {
    %c0_i32 = arith.constant 0 : i32
    %c0_i32_0 = arith.constant 0 : i32
    return %arg0, %c0_i32 : i32, i32
  }
}

module attributes {stable_mosaic.version = 11 : i64} {
  func.func @_embed_onehot_kernel(%arg0: i32, %arg1: memref<16x1xi32, #tpu.memory_space<vmem>>, %arg2: memref<64x128xf32, #tpu.memory_space<vmem>>, %arg3: memref<16x128xf32, #tpu.memory_space<vmem>>) attributes {dimension_semantics = [#tpu.dimension_semantics<parallel>], iteration_bounds = array<i64: 1>, scalar_prefetch = 0 : i64, scratch_operands = 0 : i64, tpu.core_type = #tpu.core_type<tc>, window_params = [{transform_indices = @transform_0, window_bounds = array<i64: 16, 1>}, {pipeline_mode = #tpu.pipeline_mode<synchronous>, transform_indices = @transform_1, window_bounds = array<i64: 64, 128>}, {transform_indices = @transform_2, window_bounds = array<i64: 16, 128>}]} {
    %c0 = arith.constant 0 : index
    %c0_0 = arith.constant 0 : index
    %0 = vector.load %arg1[%c0, %c0_0] : memref<16x1xi32, #tpu.memory_space<vmem>>, vector<16x1xi32>
    %1 = tpu.iota {dimensions = array<i32: 1>} : vector<16x64xi32>
    %2 = vector.broadcast %0 : vector<16x1xi32> to vector<16x64xi32>
    %3 = arith.cmpi eq, %2, %1 : vector<16x64xi32>
    %4 = arith.extui %3 : vector<16x64xi1> to vector<16x64xi32>
    %5 = arith.sitofp %4 : vector<16x64xi32> to vector<16x64xf32>
    %c0_1 = arith.constant 0 : index
    %c0_2 = arith.constant 0 : index
    %6 = vector.load %arg2[%c0_1, %c0_2] : memref<64x128xf32, #tpu.memory_space<vmem>>, vector<64x128xf32>
    %cst = arith.constant dense<0.000000e+00> : vector<16x128xf32>
    %7 = tpu.matmul %5, %6, %cst {dimension_numbers = #tpu.dot_dimension_numbers<[1], [0], [0], [1], [0, 0, 1, 1], [], []>} : vector<16x64xf32>, vector<64x128xf32>, vector<16x128xf32> -> vector<16x128xf32>
    %cst_3 = arith.constant 11.3137083 : f32
    %8 = vector.broadcast %cst_3 : f32 to vector<16x128xf32>
    %9 = arith.mulf %7, %8 : vector<16x128xf32>
    %c0_4 = arith.constant 0 : index
    %c0_5 = arith.constant 0 : index
    %10 = vector.load %arg3[%c0_4, %c0_5] : memref<16x128xf32, #tpu.memory_space<vmem>>, vector<16x128xf32>
    tpu.vector_store %arg3[%c0_4, %c0_5], %9 {strides = array<i32>} : memref<16x128xf32, #tpu.memory_space<vmem>>, vector<16x128xf32>,
    return
  }
  func.func @transform_0(%arg0: i32) -> (i32, i32) {
    %c0_i32 = arith.constant 0 : i32
    %c0_i32_0 = arith.constant 0 : i32
    return %arg0, %c0_i32 : i32, i32
  }
  func.func @transform_1(%arg0: i32) -> (i32, i32) {
    %c0_i32 = arith.constant 0 : i32
    %c0_i32_0 = arith.constant 0 : i32
    %c0_i32_1 = arith.constant 0 : i32
    return %c0_i32, %c0_i32_0 : i32, i32
  }
  func.func @transform_2(%arg0: i32) -> (i32, i32) {
    %c0_i32 = arith.constant 0 : i32
    %c0_i32_0 = arith.constant 0 : i32
    return %arg0, %c0_i32 : i32, i32
  }
}

</mosaic_0001>

<llo_original>
// kernel: tpu_custom_call.1
$region0: #{tpu_custom_call.1}
  #allocation0 [shape = 'u32[]', space=smem, size = 0x4, offset = 0x4, fixed_abs, tag = 'smem constant byte address 0x4 - core index']
  #allocation1 [shape = 'u32[72,128]{1,0:T(1,128)}', space=vmem, size = 0x9000, scoped, tag = 'internal scratch']
  %s0 = inlined_call_operand.vmem [shape: s32[16,1], index: 0, kind: input, shape index: {}]
  %s1 = inlined_call_operand.hbm [shape: f32[64,128], index: 1, kind: input, shape index: {}]
  %s2 = inlined_call_operand.hbm [shape: f32[16,128], index: 2, kind: output, shape index: {}]
  %s3 = sld [smem:[#allocation0]]
  $region22: #{tpu_custom_call.1} parent=0
    _
  %s5 = ssub.s32 1, %s3
  %s6 = scalar_select 0, %s5, %s3
  $region1: #{tpu_custom_call.1} parent=0
    #allocation2 [shape = 'u8[32768]{0}', space=vmem, size = 0x8000, scoped, tag = 'input window, operand 1, single buffered']
    #allocation3 [shape = 's32[1]{0}', space=sflag, size = 0x4, scoped, tag = 'scoped memory for tpu_custom_call.1']
    #allocation4 [shape = 's32[1]{0}', space=sflag, size = 0x4, scoped, tag = 'scoped memory for tpu_custom_call.1']
    #allocation5 [shape = 'u8[8192]{0}', space=vmem, size = 0x2000, scoped, tag = 'output window, operand 0, single buffered']
    %7 = vsyncpa [#allocation3], 0
    %8 = vsyncpa [#allocation4], 0
    // Predicated region
    $region2: #{tpu_custom_call.1} parent=1 // pred_check
      _
    $region3: #{tpu_custom_call.1} parent=1 // pred_check_branch
      %10 = sbr.rel (0) target = $region5
    $region4: #{tpu_custom_call.1} parent=1 // pred_region
      _
    $region5: #{tpu_custom_call.1} parent=1 // pred_fallthru
      _
    // Predicated region
    $region6: #{tpu_custom_call.1} parent=1 // pred_check
      _
    $region7: #{tpu_custom_call.1} parent=1 // pred_check_branch
      %12 = sbr.rel (0) target = $region9
    $region8: #{tpu_custom_call.1} parent=1 // pred_region
      %14 = vsyncadd [#allocation3], 0
      %s15 = sshll.u32 %s1, 4
      %s16 = int_to_ptr.hbm [resolvable:$true] %s15
      %s17 = sshll.u32 [#allocation2], 4
      %s18 = int_to_ptr.vmem [resolvable:$true] %s17
      %23 = dma.hbm_to_vmem [thread:$0]  %s16, 1024, %s18, [#allocation3], 128, 128, 8
    $region9: #{tpu_custom_call.1} parent=1 // pred_fallthru
      _
    // Predicated region
    $region10: #{tpu_custom_call.1} parent=1 // pred_check
      _
    $region11: #{tpu_custom_call.1} parent=1 // pred_check_branch
      %25 = sbr.rel (0) target = $region13
    $region12: #{tpu_custom_call.1} parent=1 // pred_region
      %27 = dma.done [#allocation3], 1024
    $region13: #{tpu_custom_call.1} parent=1 // pred_fallthru
      _
    %v28 = vld [vmem:[%s0] sm:$0xff]
    %v29 = vld [vmem:[%s0 + $0x8] sm:$0xff]
    %v30 = vlaneseq
    %v31 = vand.u32 %v30, 127
    %32 = vset.pattern.permute.xlu0 0
    %33 = vperm.xlu0 %32, %v28
    %v34 = vpop.permute.xlu0 %33
    %35 = vset.pattern.permute.xlu0 0
    %36 = vperm.xlu0 %35, %v29
    %v37 = vpop.permute.xlu0 %36
    %vm38 = vcmp.eq.s32.totalorder %v34, %v31
    %vm39 = vcmp.eq.s32.totalorder %v37, %v31
    %v40 = vsel %vm38, 1, 0
    %v41 = vsel %vm39, 1, 0
    %v42 = vcvt.s32.f32 %v40
    %v43 = vcvt.s32.f32 %v41
    %v44 = vld [vmem:[#allocation2] sm:$0xff]
    %v45 = vld [vmem:[#allocation2 + $0x8] sm:$0xff]
    %v46 = vld [vmem:[#allocation2 + $0x10] sm:$0xff]
    %v47 = vld [vmem:[#allocation2 + $0x18] sm:$0xff]
    %v48 = vld [vmem:[#allocation2 + $0x20] sm:$0xff]
    %v49 = vld [vmem:[#allocation2 + $0x28] sm:$0xff]
    %v50 = vld [vmem:[#allocation2 + $0x30] sm:$0xff]
    %v51 = vld [vmem:[#allocation2 + $0x38] sm:$0xff]
    %vm52 = vcmask 523264
    %v54 = vsel %vm52, %v42, 0
    %v57 = vsel %vm52, %v43, 0
    %59 = vmatpush.msra.mxu0 0.0
    %60 = vmatpush.msra.mxu0 0.0
    %61 = vmatpush.msra.mxu0 0.0
    %62 = vmatpush.msra.mxu0 0.0
    %63 = vmatpush.msra.mxu0 0.0
    %64 = vmatpush.msra.mxu0 0.0
    %65 = vmatpush.msra.mxu0 0.0
    %66 = vmatpush.msra.mxu0 0.0
    %67 = vmatpush.msra.mxu0 %v51
    %68 = vmatpush.msra.mxu0 %v50
    %69 = vmatpush.msra.mxu0 %v49
    %70 = vmatpush.msra.mxu0 %v48
    %71 = vmatpush.msra.mxu0 %v47
    %72 = vmatpush.msra.mxu0 %v46
    %73 = vmatpush.msra.mxu0 %v45
    %74 = vmatpush.msra.mxu0 %v44
    %75 = vmatmul.f32.gmra.mxu0 %v54
    %v76 = vpop.f32.mrf.mxu0
    %v77 = vadd.f32 0.0, %v76
    %78 = vmatmul.f32.gmra.mxu0 %v57
    %v79 = vpop.f32.mrf.mxu0
    %v80 = vadd.f32 0.0, %v79
    %81 = vdwg.mxu0
    %v82 = vmul.f32 %v77, 11.313708
    %v83 = vmul.f32 %v80, 11.313708
    %84 = vst [vmem:[#allocation5] sm:$0xff] %v82
    %85 = vst [vmem:[#allocation5 + $0x8] sm:$0xff] %v83
    // Predicated region
    $region14: #{tpu_custom_call.1} parent=1 // pred_check
      _
    $region15: #{tpu_custom_call.1} parent=1 // pred_check_branch
      %87 = sbr.rel (0) target = $region17
    $region16: #{tpu_custom_call.1} parent=1 // pred_region
      %89 = vsyncadd [#allocation4], 0
      %s90 = sshll.u32 [#allocation5], 4
      %s91 = int_to_ptr.vmem [resolvable:$true] %s90
      %s92 = sshll.u32 %s2, 4
      %s93 = int_to_ptr.hbm [resolvable:$true] %s92
      %98 = dma.vmem_to_hbm [thread:$0]  %s91, 256, %s93, [#allocation4], 128, 128, 8
    $region17: #{tpu_custom_call.1} parent=1 // pred_fallthru
      _
    // Predicated region
    $region18: #{tpu_custom_call.1} parent=1 // pred_check
      _
    $region19: #{tpu_custom_call.1} parent=1 // pred_check_branch
      %100 = sbr.rel (0) target = $region21
    $region20: #{tpu_custom_call.1} parent=1 // pred_region
      %102 = dma.done [#allocation4], 256
    $region21: #{tpu_custom_call.1} parent=1 // pred_fallthru
      _
    %103 = vsyncpa [#allocation3], 1
    %104 = vsyncpa [#allocation4], 1

// kernel: tpu_custom_call.1
$region0: #{tpu_custom_call.1}
  #allocation0 [shape = 'u32[]', space=smem, size = 0x4, offset = 0x4, fixed_abs, tag = 'smem constant byte address 0x4 - core index']
  #allocation1 [shape = 'u32[72,128]{1,0:T(1,128)}', space=vmem, size = 0x9000, scoped, tag = 'internal scratch']
  %s0 = inlined_call_operand.vmem [shape: s32[16,1], index: 0, kind: input, shape index: {}]
  %s1 = inlined_call_operand.hbm [shape: f32[64,128], index: 1, kind: input, shape index: {}]
  %s2 = inlined_call_operand.hbm [shape: f32[16,128], index: 2, kind: output, shape index: {}]
  %s3 = sld [smem:[#allocation0]]
  $region22: #{tpu_custom_call.1} parent=0
    _
  %s5 = ssub.s32 1, %s3
  %s6 = scalar_select 0, %s5, %s3
  $region1: #{tpu_custom_call.1} parent=0
    #allocation2 [shape = 'u8[32768]{0}', space=vmem, size = 0x8000, scoped, tag = 'input window, operand 1, single buffered']
    #allocation3 [shape = 's32[1]{0}', space=sflag, size = 0x4, scoped, tag = 'scoped memory for tpu_custom_call.1']
    #allocation4 [shape = 's32[1]{0}', space=sflag, size = 0x4, scoped, tag = 'scoped memory for tpu_custom_call.1']
    #allocation5 [shape = 'u8[8192]{0}', space=vmem, size = 0x2000, scoped, tag = 'output window, operand 0, single buffered']
    %7 = vsyncpa [#allocation3], 0
    %8 = vsyncpa [#allocation4], 0
    // Predicated region
    $region2: #{tpu_custom_call.1} parent=1 // pred_check
      _
    $region3: #{tpu_custom_call.1} parent=1 // pred_check_branch
      %10 = sbr.rel (0) target = $region5
    $region4: #{tpu_custom_call.1} parent=1 // pred_region
      _
    $region5: #{tpu_custom_call.1} parent=1 // pred_fallthru
      _
    // Predicated region
    $region6: #{tpu_custom_call.1} parent=1 // pred_check
      _
    $region7: #{tpu_custom_call.1} parent=1 // pred_check_branch
      %12 = sbr.rel (0) target = $region9
    $region8: #{tpu_custom_call.1} parent=1 // pred_region
      %14 = vsyncadd [#allocation3], 0
      %s15 = sshll.u32 %s1, 4
      %s16 = int_to_ptr.hbm [resolvable:$true] %s15
      %s17 = sshll.u32 [#allocation2], 4
      %s18 = int_to_ptr.vmem [resolvable:$true] %s17
      %23 = dma.hbm_to_vmem [thread:$0]  %s16, 1024, %s18, [#allocation3], 128, 128, 8
    $region9: #{tpu_custom_call.1} parent=1 // pred_fallthru
      _
    // Predicated region
    $region10: #{tpu_custom_call.1} parent=1 // pred_check
      _
    $region11: #{tpu_custom_call.1} parent=1 // pred_check_branch
      %25 = sbr.rel (0) target = $region13
    $region12: #{tpu_custom_call.1} parent=1 // pred_region
      %27 = dma.done [#allocation3], 1024
    $region13: #{tpu_custom_call.1} parent=1 // pred_fallthru
      _
    %v28 = vld [vmem:[%s0] sm:$0xff]
    %v29 = vld [vmem:[%s0 + $0x8] sm:$0xff]
    %v30 = vlaneseq
    %v31 = vand.u32 %v30, 127
    %32 = vset.pattern.permute.xlu0 0
    %33 = vperm.xlu0 %32, %v28
    %v34 = vpop.permute.xlu0 %33
    %35 = vset.pattern.permute.xlu0 0
    %36 = vperm.xlu0 %35, %v29
    %v37 = vpop.permute.xlu0 %36
    %vm38 = vcmp.eq.s32.totalorder %v34, %v31
    %vm39 = vcmp.eq.s32.totalorder %v37, %v31
    %v40 = vsel %vm38, 1, 0
    %v41 = vsel %vm39, 1, 0
    %v42 = vcvt.s32.f32 %v40
    %v43 = vcvt.s32.f32 %v41
    %v44 = vld [vmem:[#allocation2] sm:$0xff]
    %v45 = vld [vmem:[#allocation2 + $0x8] sm:$0xff]
    %v46 = vld [vmem:[#allocation2 + $0x10] sm:$0xff]
    %v47 = vld [vmem:[#allocation2 + $0x18] sm:$0xff]
    %v48 = vld [vmem:[#allocation2 + $0x20] sm:$0xff]
    %v49 = vld [vmem:[#allocation2 + $0x28] sm:$0xff]
    %v50 = vld [vmem:[#allocation2 + $0x30] sm:$0xff]
    %v51 = vld [vmem:[#allocation2 + $0x38] sm:$0xff]
    %vm52 = vcmask 523264
    %v54 = vsel %vm52, %v42, 0
    %v57 = vsel %vm52, %v43, 0
    %59 = vmatpush.msra.mxu0 0.0
    %60 = vmatpush.msra.mxu0 0.0
    %61 = vmatpush.msra.mxu0 0.0
    %62 = vmatpush.msra.mxu0 0.0
    %63 = vmatpush.msra.mxu0 0.0
    %64 = vmatpush.msra.mxu0 0.0
    %65 = vmatpush.msra.mxu0 0.0
    %66 = vmatpush.msra.mxu0 0.0
    %67 = vmatpush.msra.mxu0 %v51
    %68 = vmatpush.msra.mxu0 %v50
    %69 = vmatpush.msra.mxu0 %v49
    %70 = vmatpush.msra.mxu0 %v48
    %71 = vmatpush.msra.mxu0 %v47
    %72 = vmatpush.msra.mxu0 %v46
    %73 = vmatpush.msra.mxu0 %v45
    %74 = vmatpush.msra.mxu0 %v44
    %75 = vmatmul.f32.gmra.mxu0 %v54
    %v76 = vpop.f32.mrf.mxu0
    %v77 = vadd.f32 0.0, %v76
    %78 = vmatmul.f32.gmra.mxu0 %v57
    %v79 = vpop.f32.mrf.mxu0
    %v80 = vadd.f32 0.0, %v79
    %81 = vdwg.mxu0
    %v82 = vmul.f32 %v77, 11.313708
    %v83 = vmul.f32 %v80, 11.313708
    %84 = vst [vmem:[#allocation5] sm:$0xff] %v82
    %85 = vst [vmem:[#allocation5 + $0x8] sm:$0xff] %v83
    // Predicated region
    $region14: #{tpu_custom_call.1} parent=1 // pred_check
      _
    $region15: #{tpu_custom_call.1} parent=1 // pred_check_branch
      %87 = sbr.rel (0) target = $region17
    $region16: #{tpu_custom_call.1} parent=1 // pred_region
      %89 = vsyncadd [#allocation4], 0
      %s90 = sshll.u32 [#allocation5], 4
      %s91 = int_to_ptr.vmem [resolvable:$true] %s90
      %s92 = sshll.u32 %s2, 4
      %s93 = int_to_ptr.hbm [resolvable:$true] %s92
      %98 = dma.vmem_to_hbm [thread:$0]  %s91, 256, %s93, [#allocation4], 128, 128, 8
    $region17: #{tpu_custom_call.1} parent=1 // pred_fallthru
      _
    // Predicated region
    $region18: #{tpu_custom_call.1} parent=1 // pred_check
      _
    $region19: #{tpu_custom_call.1} parent=1 // pred_check_branch
      %100 = sbr.rel (0) target = $region21
    $region20: #{tpu_custom_call.1} parent=1 // pred_region
      %102 = dma.done [#allocation4], 256
    $region21: #{tpu_custom_call.1} parent=1 // pred_fallthru
      _
    %103 = vsyncpa [#allocation3], 1
    %104 = vsyncpa [#allocation4], 1

</llo_original>
